<compile_context>
chip_gen: v5e
topology: v5e:2x2
jax: 0.10.0
libtpu: 0.0.40
codegen_flags: <defaults>
</compile_context>

<pallas_src>
import functools

import numpy as np

import jax
import jax.numpy as jnp
from jax import lax
from jax.experimental import pallas as pl
from jax.experimental.pallas import tpu as pltpu

NEG_SLOPE = 0.01  # PyTorch F.leaky_relu default


def _lrelu(x):
    return jnp.where(x >= 0, x, NEG_SLOPE * x)


def _up8(n):
    return -(-n // 8) * 8


def _slab_layout(B):
    """Row offsets of each constant inside the packed (nrows, 128) slab."""
    Rp = _up8(B * 36)
    off, row = {}, 0
    off["w2"] = row;      row += 128        # conv2 weight (128, 64)
    off["wf0"] = row;     row += Rp         # dense1 fold, output 0 (R, 64)
    off["wf1"] = row;     row += Rp         # dense1 fold, output 1 (R, 64)
    off["rowsel"] = row;  row += _up8(B)    # per-sample row-sum matrix (B, R)
    off["b1"] = row;      row += 8          # conv1 bias tiled x4 (1, 128)
    off["b2"] = row;      row += 8          # conv2 bias (1, 64)
    off["bd1"] = row;     row += 8          # dense1 bias (1, 2)
    return off, row, Rp


def _build_im2col_index():
    """Shape-only gather table: A[pos, lane] = xpad_flat[b, idx[pos, lane]].

    lane = m*32 + s*8 + (c*4 + ki*2 + kj),  m = pool member (u,v), s = conv2
    shift (di,dj);  pos = oh*6 + ow is the conv2 output position.
    """
    idx = np.empty((36, 128), np.int32)
    for oh in range(6):
        for ow in range(6):
            pos = oh * 6 + ow
            for u in range(2):
                for v in range(2):
                    m = u * 2 + v
                    for di in range(2):
                        for dj in range(2):
                            s = di * 2 + dj
                            for c in range(2):
                                for ki in range(2):
                                    for kj in range(2):
                                        lane = m * 32 + s * 8 + c * 4 + ki * 2 + kj
                                        row = 2 * oh + 2 * di + u + ki
                                        col = 2 * ow + 2 * dj + v + kj
                                        idx[pos, lane] = c * 225 + row * 15 + col
    return idx.reshape(-1)


# ---------------------------------------------------------------------------
# Single fused kernel: conv1 + lrelu + maxpool + conv2 + lrelu + dense1.
# ---------------------------------------------------------------------------
def fused_kernel(a_ref, w1_ref, cst_ref, out_ref, *, R, B,
                 off_w2, off_wf0, off_wf1, off_rowsel, off_b1, off_b2, off_bd1):
    f32 = jnp.float32

    # conv1 pre-activations for every (pool member, conv2 shift) pair in one
    # lane-dense K=128 GEMM; output lanes = m*128 + s*32 + oc1.
    y = jnp.dot(a_ref[...], w1_ref[...], preferred_element_type=f32)        # (R, 512)

    # 2x2 max-pool == max over the four 128-lane-aligned member groups (pure VPU).
    ymax = jnp.maximum(jnp.maximum(y[:, 0:128], y[:, 128:256]),
                       jnp.maximum(y[:, 256:384], y[:, 384:512]))           # (R, 128)

    # Bias + leaky_relu commute with the max (same bias per channel, monotone fn).
    b1 = cst_ref[off_b1:off_b1 + 1, 0:128]
    p = _lrelu(ymax + b1)                                                   # pooled conv1

    # conv2: one K=128 GEMM + bias + leaky_relu.
    w2 = cst_ref[off_w2:off_w2 + 128, 0:64]
    b2 = cst_ref[off_b2:off_b2 + 1, 0:64]
    c2 = _lrelu(jnp.dot(p, w2, preferred_element_type=f32) + b2)            # (R, 64)

    # dense1 with the PyTorch (channel-major) flatten folded into per-row weights:
    #   out[b, o] = sum_{rows r of sample b} sum_oc c2[r, oc] * Wfold_o[r, oc] + bd1[o]
    wf0 = cst_ref[off_wf0:off_wf0 + R, 0:64]
    wf1 = cst_ref[off_wf1:off_wf1 + R, 0:64]
    t0 = jnp.sum(c2 * wf0, axis=-1, keepdims=True)                          # (R, 1)
    t1 = jnp.sum(c2 * wf1, axis=-1, keepdims=True)                          # (R, 1)
    t = jnp.concatenate([t0, t1], axis=-1)                                  # (R, 2)

    # Per-sample row sum. B is tiny here; note RowSel is O(B*R)=O(B^2) — for a
    # large batch this should become a "parallel" batch grid axis instead.
    rowsel = cst_ref[off_rowsel:off_rowsel + B, 0:R]                        # (B, R)
    bd1 = cst_ref[off_bd1:off_bd1 + 1, 0:2]
    out_ref[...] = jnp.dot(rowsel, t, preferred_element_type=f32) + bd1     # (B, 2)


# ---------------------------------------------------------------------------
# One-time constant preparation (per params / batch size).
# ---------------------------------------------------------------------------
def prepare_params(params, batch):
    B = int(batch)
    R = B * 36
    off, nrows, Rp = _slab_layout(B)
    f32 = jnp.float32

    w1 = params["conv1_w"].astype(f32)     # (32, 2, 2, 2)
    b1 = params["conv1_b"].astype(f32)     # (32,)
    w2 = params["conv2_w"].astype(f32)     # (64, 32, 2, 2)
    b2 = params["conv2_b"].astype(f32)     # (64,)
    wd1 = params["dense1_w"].astype(f32)   # (2, 2304)
    bd1 = params["dense1_b"].astype(f32)   # (2,)

    # conv1 weight, block-diagonal over (pool member m, conv2 shift s):
    # rows = m*32 + s*8 + (c,ki,kj); cols = m*128 + s*32 + oc1.
    w1m = w1.reshape(32, 8).T                           # (8, 32)
    w1huge = jnp.kron(jnp.eye(16, dtype=f32), w1m)      # (128, 512)

    # conv2 weight as one K=128 GEMM: rows = (di,dj,ic), cols = oc2.
    w2cat = w2.transpose(2, 3, 1, 0).reshape(128, 64)

    # dense1 fold: Wfold_o[pos, oc] = wd1[o, oc*36 + pos] (PyTorch flatten order).
    wf = wd1.reshape(2, 64, 36).transpose(0, 2, 1)      # (2, 36, 64)
    rowsel = jnp.kron(jnp.eye(B, dtype=f32), jnp.ones((1, 36), f32))   # (B, R)

    slab = jnp.zeros((nrows, 128), f32)
    slab = slab.at[off["w2"]:off["w2"] + 128, 0:64].set(w2cat)
    slab = slab.at[off["wf0"]:off["wf0"] + R, 0:64].set(jnp.tile(wf[0], (B, 1)))
    slab = slab.at[off["wf1"]:off["wf1"] + R, 0:64].set(jnp.tile(wf[1], (B, 1)))
    slab = slab.at[off["rowsel"]:off["rowsel"] + B, 0:R].set(rowsel)
    slab = slab.at[off["b1"], 0:128].set(jnp.tile(b1, 4))
    slab = slab.at[off["b2"], 0:64].set(b2)
    slab = slab.at[off["bd1"], 0:2].set(bd1)

    idx = jnp.asarray(_build_im2col_index())            # (36*128,) int32, shape-only

    return {"w1huge": w1huge, "slab": slab, "idx": idx}


# ---------------------------------------------------------------------------
# Per-call forward: pad + one gather + one fused pallas_call.
# ---------------------------------------------------------------------------
@jax.jit
def model_forward(x, prep):
    # x: (B, 2, 13, 13) float32 (NCHW)
    B = x.shape[0]
    R = B * 36
    off, nrows, Rp = _slab_layout(B)

    xpad = jnp.pad(x.astype(jnp.float32), ((0, 0), (0, 0), (1, 1), (1, 1)))
    xflat = xpad.reshape(B, 2 * 15 * 15)
    A = jnp.take(xflat, prep["idx"], axis=1).reshape(R, 128)   # im2col in one gather
    if Rp != R:                                                # 8-align rows for odd B
        A = jnp.pad(A, ((0, Rp - R), (0, 0)))

    kernel = functools.partial(
        fused_kernel, R=Rp, B=B,
        off_w2=off["w2"], off_wf0=off["wf0"], off_wf1=off["wf1"],
        off_rowsel=off["rowsel"], off_b1=off["b1"], off_b2=off["b2"],
        off_bd1=off["bd1"])

    return pl.pallas_call(
        kernel,
        out_shape=jax.ShapeDtypeStruct((B, 2), jnp.float32),
        grid=(1,),
        in_specs=[
            pl.BlockSpec((Rp, 128), lambda i: (0, 0)),      # A (im2col'd input)
            pl.BlockSpec((128, 512), lambda i: (0, 0)),     # conv1 block-diag weight
            pl.BlockSpec((nrows, 128), lambda i: (0, 0)),   # packed constant slab
        ],
        out_specs=pl.BlockSpec((B, 2), lambda i: (0, 0)),
        compiler_params=pltpu.CompilerParams(dimension_semantics=("arbitrary",)),
    )(A, prep["w1huge"], prep["slab"])


# ---------------------------------------------------------------------------
# Pure-JAX reference (mirrors the PyTorch forward) for a correctness check.
# ---------------------------------------------------------------------------
def _ref_forward(x, params):
    def conv(inp, w, b, pad):
        out = lax.conv_general_dilated(
            inp, w, window_strides=(1, 1),
            padding=((pad, pad), (pad, pad)),
            dimension_numbers=("NCHW", "OIHW", "NCHW"))
        return out + b[None, :, None, None]

    h = jax.nn.leaky_relu(conv(x, params["conv1_w"], params["conv1_b"], 1), NEG_SLOPE)
    h = lax.reduce_window(h, -jnp.inf, lax.max, (1, 1, 2, 2), (1, 1, 2, 2), "VALID")
    h = jax.nn.leaky_relu(conv(h, params["conv2_w"], params["conv2_b"], 0), NEG_SLOPE)
    h = h.reshape(h.shape[0], -1)
    return h @ params["dense1_w"].T + params["dense1_b"]


# ---------------------------------------------------------------------------
def make_params(key):
    keys = jax.random.split(key, 6)

    def uinit(k, shape, fan_in):
        bound = 1.0 / float(fan_in) ** 0.5
        return jax.random.uniform(k, shape, jnp.float32, -bound, bound)

    return {
        "conv1_w": uinit(keys[0], (32, 2, 2, 2), 8),
        "conv1_b": uinit(keys[1], (32,), 8),
        "conv2_w": uinit(keys[2], (64, 32, 2, 2), 128),
        "conv2_b": uinit(keys[3], (64,), 128),
        "dense1_w": uinit(keys[4], (2, 2304), 2304),
        "dense1_b": uinit(keys[5], (2,), 2304),
    }


if __name__ == "__main__":
    key = jax.random.PRNGKey(0)
    k_params, k_x = jax.random.split(key)
    params = make_params(k_params)
    x = jax.random.normal(k_x, (2, 2, 13, 13), dtype=jnp.float32)

    prep = prepare_params(params, batch=x.shape[0])   # one-time constant prep
    out = model_forward(x, prep)
    jax.block_until_ready(out)

    ref = _ref_forward(x, params)
    assert out.shape == (2, 2)
    assert jnp.allclose(out, ref, atol=1e-4, rtol=1e-4), (out, ref)

    print("KERNEL_OK")
</pallas_src>

<mosaic_0001>
module attributes {stable_mosaic.version = 11 : i64} {
  func.func @fused_kernel(%arg0: i32, %arg1: memref<72x128xf32, #tpu.memory_space<vmem>>, %arg2: memref<128x512xf32, #tpu.memory_space<vmem>>, %arg3: memref<304x128xf32, #tpu.memory_space<vmem>>, %arg4: memref<2x2xf32, #tpu.memory_space<vmem>>) attributes {dimension_semantics = [#tpu.dimension_semantics<arbitrary>], iteration_bounds = array<i64: 1>, scalar_prefetch = 0 : i64, scratch_operands = 0 : i64, tpu.core_type = #tpu.core_type<tc>, window_params = [{pipeline_mode = #tpu.pipeline_mode<synchronous>, transform_indices = @transform_0, window_bounds = array<i64: 72, 128>}, {pipeline_mode = #tpu.pipeline_mode<synchronous>, transform_indices = @transform_1, window_bounds = array<i64: 128, 512>}, {pipeline_mode = #tpu.pipeline_mode<synchronous>, transform_indices = @transform_2, window_bounds = array<i64: 304, 128>}, {pipeline_mode = #tpu.pipeline_mode<synchronous>, transform_indices = @transform_3, window_bounds = array<i64: 2, 2>}]} {
    %c0 = arith.constant 0 : index
    %c0_0 = arith.constant 0 : index
    %0 = vector.load %arg1[%c0, %c0_0] : memref<72x128xf32, #tpu.memory_space<vmem>>, vector<72x128xf32>
    %c0_1 = arith.constant 0 : index
    %c0_2 = arith.constant 0 : index
    %1 = vector.load %arg2[%c0_1, %c0_2] : memref<128x512xf32, #tpu.memory_space<vmem>>, vector<128x512xf32>
    %cst = arith.constant dense<0.000000e+00> : vector<72x512xf32>
    %2 = tpu.matmul %0, %1, %cst {dimension_numbers = #tpu.dot_dimension_numbers<[1], [0], [0], [1], [0, 0, 1, 1], [], []>} : vector<72x128xf32>, vector<128x512xf32>, vector<72x512xf32> -> vector<72x512xf32>
    %3 = vector.extract_strided_slice %2 {offsets = [0, 0], sizes = [72, 128], strides = [1, 1]} : vector<72x512xf32> to vector<72x128xf32>
    %4 = vector.extract_strided_slice %2 {offsets = [0, 128], sizes = [72, 128], strides = [1, 1]} : vector<72x512xf32> to vector<72x128xf32>
    %5 = arith.maximumf %3, %4 : vector<72x128xf32>
    %6 = vector.extract_strided_slice %2 {offsets = [0, 256], sizes = [72, 128], strides = [1, 1]} : vector<72x512xf32> to vector<72x128xf32>
    %7 = vector.extract_strided_slice %2 {offsets = [0, 384], sizes = [72, 128], strides = [1, 1]} : vector<72x512xf32> to vector<72x128xf32>
    %8 = arith.maximumf %6, %7 : vector<72x128xf32>
    %9 = arith.maximumf %5, %8 : vector<72x128xf32>
    %c280 = arith.constant 280 : index
    %c0_3 = arith.constant 0 : index
    %10 = vector.load %arg3[%c280, %c0_3] : memref<304x128xf32, #tpu.memory_space<vmem>>, vector<1x128xf32>
    %11 = vector.broadcast %10 : vector<1x128xf32> to vector<72x128xf32>
    %12 = arith.addf %9, %11 : vector<72x128xf32>
    %cst_4 = arith.constant 0.000000e+00 : f32
    %13 = vector.broadcast %cst_4 : f32 to vector<72x128xf32>
    %14 = arith.cmpf oge, %12, %13 : vector<72x128xf32>
    %cst_5 = arith.constant 0.00999999977 : f32
    %15 = vector.broadcast %cst_5 : f32 to vector<72x128xf32>
    %16 = arith.mulf %15, %12 : vector<72x128xf32>
    %17 = arith.select %14, %12, %16 : vector<72x128xi1>, vector<72x128xf32>
    %c0_6 = arith.constant 0 : index
    %c0_7 = arith.constant 0 : index
    %18 = vector.load %arg3[%c0_6, %c0_7] : memref<304x128xf32, #tpu.memory_space<vmem>>, vector<128x64xf32>
    %c288 = arith.constant 288 : index
    %c0_8 = arith.constant 0 : index
    %19 = vector.load %arg3[%c288, %c0_8] : memref<304x128xf32, #tpu.memory_space<vmem>>, vector<1x64xf32>
    %cst_9 = arith.constant dense<0.000000e+00> : vector<72x64xf32>
    %20 = tpu.matmul %17, %18, %cst_9 {dimension_numbers = #tpu.dot_dimension_numbers<[1], [0], [0], [1], [0, 0, 1, 1], [], []>} : vector<72x128xf32>, vector<128x64xf32>, vector<72x64xf32> -> vector<72x64xf32>
    %21 = vector.broadcast %19 : vector<1x64xf32> to vector<72x64xf32>
    %22 = arith.addf %20, %21 : vector<72x64xf32>
    %cst_10 = arith.constant 0.000000e+00 : f32
    %23 = vector.broadcast %cst_10 : f32 to vector<72x64xf32>
    %24 = arith.cmpf oge, %22, %23 : vector<72x64xf32>
    %cst_11 = arith.constant 0.00999999977 : f32
    %25 = vector.broadcast %cst_11 : f32 to vector<72x64xf32>
    %26 = arith.mulf %25, %22 : vector<72x64xf32>
    %27 = arith.select %24, %22, %26 : vector<72x64xi1>, vector<72x64xf32>
    %c128 = arith.constant 128 : index
    %c0_12 = arith.constant 0 : index
    %28 = vector.load %arg3[%c128, %c0_12] : memref<304x128xf32, #tpu.memory_space<vmem>>, vector<72x64xf32>
    %c200 = arith.constant 200 : index
    %c0_13 = arith.constant 0 : index
    %29 = vector.load %arg3[%c200, %c0_13] : memref<304x128xf32, #tpu.memory_space<vmem>>, vector<72x64xf32>
    %30 = arith.mulf %27, %28 : vector<72x64xf32>
    %cst_14 = arith.constant dense<0.000000e+00> : vector<72xf32>
    %31 = vector.multi_reduction <add>, %30, %cst_14 [1] : vector<72x64xf32> to vector<72xf32>
    %32 = vector.shape_cast %31 : vector<72xf32> to vector<72x1xf32>
    %33 = arith.mulf %27, %29 : vector<72x64xf32>
    %cst_15 = arith.constant dense<0.000000e+00> : vector<72xf32>
    %34 = vector.multi_reduction <add>, %33, %cst_15 [1] : vector<72x64xf32> to vector<72xf32>
    %35 = vector.shape_cast %34 : vector<72xf32> to vector<72x1xf32>
    %36 = tpu.concatenate %32, %35 in 1 : vector<72x1xf32>, vector<72x1xf32> -> vector<72x2xf32>
    %c272 = arith.constant 272 : index
    %c0_16 = arith.constant 0 : index
    %37 = vector.load %arg3[%c272, %c0_16] : memref<304x128xf32, #tpu.memory_space<vmem>>, vector<2x72xf32>
    %c296 = arith.constant 296 : index
    %c0_17 = arith.constant 0 : index
    %38 = vector.load %arg3[%c296, %c0_17] : memref<304x128xf32, #tpu.memory_space<vmem>>, vector<1x2xf32>
    %cst_18 = arith.constant dense<0.000000e+00> : vector<2x2xf32>
    %39 = tpu.matmul %37, %36, %cst_18 {dimension_numbers = #tpu.dot_dimension_numbers<[1], [0], [0], [1], [0, 0, 1, 1], [], []>} : vector<2x72xf32>, vector<72x2xf32>, vector<2x2xf32> -> vector<2x2xf32>
    %40 = vector.broadcast %38 : vector<1x2xf32> to vector<2x2xf32>
    %41 = arith.addf %39, %40 : vector<2x2xf32>
    %c0_19 = arith.constant 0 : index
    %c0_20 = arith.constant 0 : index
    %42 = vector.load %arg4[%c0_19, %c0_20] : memref<2x2xf32, #tpu.memory_space<vmem>>, vector<2x2xf32>
    tpu.vector_store %arg4[%c0_19, %c0_20], %41 {strides = array<i32>} : memref<2x2xf32, #tpu.memory_space<vmem>>, vector<2x2xf32>,
    return
  }
  func.func @transform_0(%arg0: i32) -> (i32, i32) {
    %c0_i32 = arith.constant 0 : i32
    %c0_i32_0 = arith.constant 0 : i32
    %c0_i32_1 = arith.constant 0 : i32
    return %c0_i32, %c0_i32_0 : i32, i32
  }
  func.func @transform_1(%arg0: i32) -> (i32, i32) {
    %c0_i32 = arith.constant 0 : i32
    %c0_i32_0 = arith.constant 0 : i32
    %c0_i32_1 = arith.constant 0 : i32
    return %c0_i32, %c0_i32_0 : i32, i32
  }
  func.func @transform_2(%arg0: i32) -> (i32, i32) {
    %c0_i32 = arith.constant 0 : i32
    %c0_i32_0 = arith.constant 0 : i32
    %c0_i32_1 = arith.constant 0 : i32
    return %c0_i32, %c0_i32_0 : i32, i32
  }
  func.func @transform_3(%arg0: i32) -> (i32, i32) {
    %c0_i32 = arith.constant 0 : i32
    %c0_i32_0 = arith.constant 0 : i32
    %c0_i32_1 = arith.constant 0 : i32
    return %c0_i32, %c0_i32_0 : i32, i32
  }
}

</mosaic_0001>

<llo_original>
// kernel: model_forward.1
$region0: #{model_forward.1}
  #allocation0 [shape = 'u32[]', space=smem, size = 0x4, offset = 0x4, fixed_abs, tag = 'smem constant byte address 0x4 - core index']
  #allocation1 [shape = 'u32[72,128]{1,0:T(1,128)}', space=vmem, size = 0x9000, scoped, tag = 'internal scratch']
  %s0 = inlined_call_operand.vmem [shape: f32[72,128], index: 0, kind: input, shape index: {}]
  %s1 = inlined_call_operand.vmem [shape: f32[128,512], index: 1, kind: input, shape index: {}]
  %s2 = inlined_call_operand.vmem [shape: f32[304,128], index: 2, kind: input, shape index: {}]
  %s3 = inlined_call_operand.hbm [shape: f32[2,2], index: 3, kind: output, shape index: {}]
  %s4 = sld [smem:[#allocation0]]
  $region22: #{model_forward.1} parent=0
    _
  %s6 = ssub.s32 1, %s4
  %s7 = scalar_select 0, %s6, %s4
  $region1: #{model_forward.1} parent=0
    #allocation2 [shape = 'u8[1024]{0}', space=vmem, size = 0x400, scoped, tag = 'output window, operand 0, single buffered']
    #allocation3 [shape = 's32[1]{0}', space=sflag, size = 0x4, scoped, tag = 'scoped memory for model_forward.1']
    %8 = vsyncpa [#allocation3], 0
    // Predicated region
    $region2: #{model_forward.1} parent=1 // pred_check
      _
    $region3: #{model_forward.1} parent=1 // pred_check_branch
      %10 = sbr.rel (0) target = $region5
    $region4: #{model_forward.1} parent=1 // pred_region
      _
    $region5: #{model_forward.1} parent=1 // pred_fallthru
      _
    // Predicated region
    $region6: #{model_forward.1} parent=1 // pred_check
      _
    $region7: #{model_forward.1} parent=1 // pred_check_branch
      %12 = sbr.rel (0) target = $region9
    $region8: #{model_forward.1} parent=1 // pred_region
      _
    $region9: #{model_forward.1} parent=1 // pred_fallthru
      _
    // Predicated region
    $region10: #{model_forward.1} parent=1 // pred_check
      _
    $region11: #{model_forward.1} parent=1 // pred_check_branch
      %14 = sbr.rel (0) target = $region13
    $region12: #{model_forward.1} parent=1 // pred_region
      _
    $region13: #{model_forward.1} parent=1 // pred_fallthru
      _
    %v15 = vld [vmem:[%s0] sm:$0xff]
    %v16 = vld [vmem:[%s0 + $0x8] sm:$0xff]
    %v17 = vld [vmem:[%s0 + $0x10] sm:$0xff]
    %v18 = vld [vmem:[%s0 + $0x18] sm:$0xff]
    %v19 = vld [vmem:[%s0 + $0x20] sm:$0xff]
    %v20 = vld [vmem:[%s0 + $0x28] sm:$0xff]
    %v21 = vld [vmem:[%s0 + $0x30] sm:$0xff]
    %v22 = vld [vmem:[%s0 + $0x38] sm:$0xff]
    %v23 = vld [vmem:[%s0 + $0x40] sm:$0xff]
    %v24 = vld [vmem:[%s1] sm:$0xff]
    %v25 = vld [vmem:[%s1 + $0x8] sm:$0xff]
    %v26 = vld [vmem:[%s1 + $0x10] sm:$0xff]
    %v27 = vld [vmem:[%s1 + $0x18] sm:$0xff]
    %v28 = vld [vmem:[%s1 + $0x20] sm:$0xff]
    %v29 = vld [vmem:[%s1 + $0x28] sm:$0xff]
    %v30 = vld [vmem:[%s1 + $0x30] sm:$0xff]
    %v31 = vld [vmem:[%s1 + $0x38] sm:$0xff]
    %v32 = vld [vmem:[%s1 + $0x40] sm:$0xff]
    %v33 = vld [vmem:[%s1 + $0x48] sm:$0xff]
    %v34 = vld [vmem:[%s1 + $0x50] sm:$0xff]
    %v35 = vld [vmem:[%s1 + $0x58] sm:$0xff]
    %v36 = vld [vmem:[%s1 + $0x60] sm:$0xff]
    %v37 = vld [vmem:[%s1 + $0x68] sm:$0xff]
    %v38 = vld [vmem:[%s1 + $0x70] sm:$0xff]
    %v39 = vld [vmem:[%s1 + $0x78] sm:$0xff]
    %v40 = vld [vmem:[%s1 + $0x80] sm:$0xff]
    %v41 = vld [vmem:[%s1 + $0x88] sm:$0xff]
    %v42 = vld [vmem:[%s1 + $0x90] sm:$0xff]
    %v43 = vld [vmem:[%s1 + $0x98] sm:$0xff]
    %v44 = vld [vmem:[%s1 + $0xa0] sm:$0xff]
    %v45 = vld [vmem:[%s1 + $0xa8] sm:$0xff]
    %v46 = vld [vmem:[%s1 + $0xb0] sm:$0xff]
    %v47 = vld [vmem:[%s1 + $0xb8] sm:$0xff]
    %v48 = vld [vmem:[%s1 + $0xc0] sm:$0xff]
    %v49 = vld [vmem:[%s1 + $0xc8] sm:$0xff]
    %v50 = vld [vmem:[%s1 + $0xd0] sm:$0xff]
    %v51 = vld [vmem:[%s1 + $0xd8] sm:$0xff]
    %v52 = vld [vmem:[%s1 + $0xe0] sm:$0xff]
    %v53 = vld [vmem:[%s1 + $0xe8] sm:$0xff]
    %v54 = vld [vmem:[%s1 + $0xf0] sm:$0xff]
    %v55 = vld [vmem:[%s1 + $0xf8] sm:$0xff]
    %v56 = vld [vmem:[%s1 + $0x100] sm:$0xff]
    %v57 = vld [vmem:[%s1 + $0x108] sm:$0xff]
    %v58 = vld [vmem:[%s1 + $0x110] sm:$0xff]
    %v59 = vld [vmem:[%s1 + $0x118] sm:$0xff]
    %v60 = vld [vmem:[%s1 + $0x120] sm:$0xff]
    %v61 = vld [vmem:[%s1 + $0x128] sm:$0xff]
    %v62 = vld [vmem:[%s1 + $0x130] sm:$0xff]
    %v63 = vld [vmem:[%s1 + $0x138] sm:$0xff]
    %v64 = vld [vmem:[%s1 + $0x140] sm:$0xff]
    %v65 = vld [vmem:[%s1 + $0x148] sm:$0xff]
    %v66 = vld [vmem:[%s1 + $0x150] sm:$0xff]
    %v67 = vld [vmem:[%s1 + $0x158] sm:$0xff]
    %v68 = vld [vmem:[%s1 + $0x160] sm:$0xff]
    %v69 = vld [vmem:[%s1 + $0x168] sm:$0xff]
    %v70 = vld [vmem:[%s1 + $0x170] sm:$0xff]
    %v71 = vld [vmem:[%s1 + $0x178] sm:$0xff]
    %v72 = vld [vmem:[%s1 + $0x180] sm:$0xff]
    %v73 = vld [vmem:[%s1 + $0x188] sm:$0xff]
    %v74 = vld [vmem:[%s1 + $0x190] sm:$0xff]
    %v75 = vld [vmem:[%s1 + $0x198] sm:$0xff]
    %v76 = vld [vmem:[%s1 + $0x1a0] sm:$0xff]
    %v77 = vld [vmem:[%s1 + $0x1a8] sm:$0xff]
    %v78 = vld [vmem:[%s1 + $0x1b0] sm:$0xff]
    %v79 = vld [vmem:[%s1 + $0x1b8] sm:$0xff]
    %v80 = vld [vmem:[%s1 + $0x1c0] sm:$0xff]
    %v81 = vld [vmem:[%s1 + $0x1c8] sm:$0xff]
    %v82 = vld [vmem:[%s1 + $0x1d0] sm:$0xff]
    %v83 = vld [vmem:[%s1 + $0x1d8] sm:$0xff]
    %v84 = vld [vmem:[%s1 + $0x1e0] sm:$0xff]
    %v85 = vld [vmem:[%s1 + $0x1e8] sm:$0xff]
    %v86 = vld [vmem:[%s1 + $0x1f0] sm:$0xff]
    %v87 = vld [vmem:[%s1 + $0x1f8] sm:$0xff]
    %88 = vmatpush.msra.mxu0 %v84
    %89 = vmatpush.msra.mxu0 %v80
    %90 = vmatpush.msra.mxu0 %v76
    %91 = vmatpush.msra.mxu0 %v72
    %92 = vmatpush.msra.mxu0 %v68
    %93 = vmatpush.msra.mxu0 %v64
    %94 = vmatpush.msra.mxu0 %v60
    %95 = vmatpush.msra.mxu0 %v56
    %96 = vmatpush.msra.mxu0 %v52
    %97 = vmatpush.msra.mxu0 %v48
    %98 = vmatpush.msra.mxu0 %v44
    %99 = vmatpush.msra.mxu0 %v40
    %100 = vmatpush.msra.mxu0 %v36
    %101 = vmatpush.msra.mxu0 %v32
    %102 = vmatpush.msra.mxu0 %v28
    %103 = vmatpush.msra.mxu0 %v24
    %104 = vmatmul.f32.gmra.mxu0 %v15
    %v105 = vpop.f32.mrf.mxu0
    %v106 = vadd.f32 0.0, %v105
    %107 = vmatmul.f32.gmra.mxu0 %v16
    %v108 = vpop.f32.mrf.mxu0
    %v109 = vadd.f32 0.0, %v108
    %110 = vmatmul.f32.gmra.mxu0 %v17
    %v111 = vpop.f32.mrf.mxu0
    %v112 = vadd.f32 0.0, %v111
    %113 = vmatmul.f32.gmra.mxu0 %v18
    %v114 = vpop.f32.mrf.mxu0
    %v115 = vadd.f32 0.0, %v114
    %116 = vmatmul.f32.gmra.mxu0 %v19
    %v117 = vpop.f32.mrf.mxu0
    %v118 = vadd.f32 0.0, %v117
    %119 = vmatmul.f32.gmra.mxu0 %v20
    %v120 = vpop.f32.mrf.mxu0
    %v121 = vadd.f32 0.0, %v120
    %122 = vmatmul.f32.gmra.mxu0 %v21
    %v123 = vpop.f32.mrf.mxu0
    %v124 = vadd.f32 0.0, %v123
    %125 = vmatmul.f32.gmra.mxu0 %v22
    %v126 = vpop.f32.mrf.mxu0
    %v127 = vadd.f32 0.0, %v126
    %128 = vmatmul.f32.gmra.mxu0 %v23
    %v129 = vpop.f32.mrf.mxu0
    %v130 = vadd.f32 0.0, %v129
    %131 = vdwg.mxu0
    %132 = vmatpush.msra.mxu0 %v85
    %133 = vmatpush.msra.mxu0 %v81
    %134 = vmatpush.msra.mxu0 %v77
    %135 = vmatpush.msra.mxu0 %v73
    %136 = vmatpush.msra.mxu0 %v69
    %137 = vmatpush.msra.mxu0 %v65
    %138 = vmatpush.msra.mxu0 %v61
    %139 = vmatpush.msra.mxu0 %v57
    %140 = vmatpush.msra.mxu0 %v53
    %141 = vmatpush.msra.mxu0 %v49
    %142 = vmatpush.msra.mxu0 %v45
    %143 = vmatpush.msra.mxu0 %v41
    %144 = vmatpush.msra.mxu0 %v37
    %145 = vmatpush.msra.mxu0 %v33
    %146 = vmatpush.msra.mxu0 %v29
    %147 = vmatpush.msra.mxu0 %v25
    %148 = vmatmul.f32.gmra.mxu0 %v15
    %v149 = vpop.f32.mrf.mxu0
    %v150 = vadd.f32 0.0, %v149
    %151 = vmatmul.f32.gmra.mxu0 %v16
    %v152 = vpop.f32.mrf.mxu0
    %v153 = vadd.f32 0.0, %v152
    %154 = vmatmul.f32.gmra.mxu0 %v17
    %v155 = vpop.f32.mrf.mxu0
    %v156 = vadd.f32 0.0, %v155
    %157 = vmatmul.f32.gmra.mxu0 %v18
    %v158 = vpop.f32.mrf.mxu0
    %v159 = vadd.f32 0.0, %v158
    %160 = vmatmul.f32.gmra.mxu0 %v19
    %v161 = vpop.f32.mrf.mxu0
    %v162 = vadd.f32 0.0, %v161
    %163 = vmatmul.f32.gmra.mxu0 %v20
    %v164 = vpop.f32.mrf.mxu0
    %v165 = vadd.f32 0.0, %v164
    %166 = vmatmul.f32.gmra.mxu0 %v21
    %v167 = vpop.f32.mrf.mxu0
    %v168 = vadd.f32 0.0, %v167
    %169 = vmatmul.f32.gmra.mxu0 %v22
    %v170 = vpop.f32.mrf.mxu0
    %v171 = vadd.f32 0.0, %v170
    %172 = vmatmul.f32.gmra.mxu0 %v23
    %v173 = vpop.f32.mrf.mxu0
    %v174 = vadd.f32 0.0, %v173
    %175 = vdwg.mxu0
    %176 = vmatpush.msra.mxu0 %v86
    %177 = vmatpush.msra.mxu0 %v82
    %178 = vmatpush.msra.mxu0 %v78
    %179 = vmatpush.msra.mxu0 %v74
    %180 = vmatpush.msra.mxu0 %v70
    %181 = vmatpush.msra.mxu0 %v66
    %182 = vmatpush.msra.mxu0 %v62
    %183 = vmatpush.msra.mxu0 %v58
    %184 = vmatpush.msra.mxu0 %v54
    %185 = vmatpush.msra.mxu0 %v50
    %186 = vmatpush.msra.mxu0 %v46
    %187 = vmatpush.msra.mxu0 %v42
    %188 = vmatpush.msra.mxu0 %v38
    %189 = vmatpush.msra.mxu0 %v34
    %190 = vmatpush.msra.mxu0 %v30
    %191 = vmatpush.msra.mxu0 %v26
    %192 = vmatmul.f32.gmra.mxu0 %v15
    %v193 = vpop.f32.mrf.mxu0
    %v194 = vadd.f32 0.0, %v193
    %195 = vmatmul.f32.gmra.mxu0 %v16
    %v196 = vpop.f32.mrf.mxu0
    %v197 = vadd.f32 0.0, %v196
    %198 = vmatmul.f32.gmra.mxu0 %v17
    %v199 = vpop.f32.mrf.mxu0
    %v200 = vadd.f32 0.0, %v199
    %201 = vmatmul.f32.gmra.mxu0 %v18
    %v202 = vpop.f32.mrf.mxu0
    %v203 = vadd.f32 0.0, %v202
    %204 = vmatmul.f32.gmra.mxu0 %v19
    %v205 = vpop.f32.mrf.mxu0
    %v206 = vadd.f32 0.0, %v205
    %207 = vmatmul.f32.gmra.mxu0 %v20
    %v208 = vpop.f32.mrf.mxu0
    %v209 = vadd.f32 0.0, %v208
    %210 = vmatmul.f32.gmra.mxu0 %v21
    %v211 = vpop.f32.mrf.mxu0
    %v212 = vadd.f32 0.0, %v211
    %213 = vmatmul.f32.gmra.mxu0 %v22
    %v214 = vpop.f32.mrf.mxu0
    %v215 = vadd.f32 0.0, %v214
    %216 = vmatmul.f32.gmra.mxu0 %v23
    %v217 = vpop.f32.mrf.mxu0
    %v218 = vadd.f32 0.0, %v217
    %219 = vdwg.mxu0
    %220 = vmatpush.msra.mxu0 %v87
    %221 = vmatpush.msra.mxu0 %v83
    %222 = vmatpush.msra.mxu0 %v79
    %223 = vmatpush.msra.mxu0 %v75
    %224 = vmatpush.msra.mxu0 %v71
    %225 = vmatpush.msra.mxu0 %v67
    %226 = vmatpush.msra.mxu0 %v63
    %227 = vmatpush.msra.mxu0 %v59
    %228 = vmatpush.msra.mxu0 %v55
    %229 = vmatpush.msra.mxu0 %v51
    %230 = vmatpush.msra.mxu0 %v47
    %231 = vmatpush.msra.mxu0 %v43
    %232 = vmatpush.msra.mxu0 %v39
    %233 = vmatpush.msra.mxu0 %v35
    %234 = vmatpush.msra.mxu0 %v31
    %235 = vmatpush.msra.mxu0 %v27
    %236 = vmatmul.f32.gmra.mxu0 %v15
    %v237 = vpop.f32.mrf.mxu0
    %v238 = vadd.f32 0.0, %v237
    %239 = vmatmul.f32.gmra.mxu0 %v16
    %v240 = vpop.f32.mrf.mxu0
    %v241 = vadd.f32 0.0, %v240
    %242 = vmatmul.f32.gmra.mxu0 %v17
    %v243 = vpop.f32.mrf.mxu0
    %v244 = vadd.f32 0.0, %v243
    %245 = vmatmul.f32.gmra.mxu0 %v18
    %v246 = vpop.f32.mrf.mxu0
    %v247 = vadd.f32 0.0, %v246
    %248 = vmatmul.f32.gmra.mxu0 %v19
    %v249 = vpop.f32.mrf.mxu0
    %v250 = vadd.f32 0.0, %v249
    %251 = vmatmul.f32.gmra.mxu0 %v20
    %v252 = vpop.f32.mrf.mxu0
    %v253 = vadd.f32 0.0, %v252
    %254 = vmatmul.f32.gmra.mxu0 %v21
    %v255 = vpop.f32.mrf.mxu0
    %v256 = vadd.f32 0.0, %v255
    %257 = vmatmul.f32.gmra.mxu0 %v22
    %v258 = vpop.f32.mrf.mxu0
    %v259 = vadd.f32 0.0, %v258
    %260 = vmatmul.f32.gmra.mxu0 %v23
    %v261 = vpop.f32.mrf.mxu0
    %v262 = vadd.f32 0.0, %v261
    %263 = vdwg.mxu0
    %v264 = vmax.f32 %v106, %v150
    %v265 = vmax.f32 %v109, %v153
    %v266 = vmax.f32 %v112, %v156
    %v267 = vmax.f32 %v115, %v159
    %v268 = vmax.f32 %v118, %v162
    %v269 = vmax.f32 %v121, %v165
    %v270 = vmax.f32 %v124, %v168
    %v271 = vmax.f32 %v127, %v171
    %v272 = vmax.f32 %v130, %v174
    %v273 = vmax.f32 %v194, %v238
    %v274 = vmax.f32 %v197, %v241
    %v275 = vmax.f32 %v200, %v244
    %v276 = vmax.f32 %v203, %v247
    %v277 = vmax.f32 %v206, %v250
    %v278 = vmax.f32 %v209, %v253
    %v279 = vmax.f32 %v212, %v256
    %v280 = vmax.f32 %v215, %v259
    %v281 = vmax.f32 %v218, %v262
    %v282 = vmax.f32 %v264, %v273
    %v283 = vmax.f32 %v265, %v274
    %v284 = vmax.f32 %v266, %v275
    %v285 = vmax.f32 %v267, %v276
    %v286 = vmax.f32 %v268, %v277
    %v287 = vmax.f32 %v269, %v278
    %v288 = vmax.f32 %v270, %v279
    %v289 = vmax.f32 %v271, %v280
    %v290 = vmax.f32 %v272, %v281
    %v291 = vld [vmem:[%s2 + $0x118] sm:$0x1]
    %v292 = vperm.slane %v291, 0
    %v293 = vadd.f32 %v282, %v292
    %v294 = vadd.f32 %v283, %v292
    %v295 = vadd.f32 %v284, %v292
    %v296 = vadd.f32 %v285, %v292
    %v297 = vadd.f32 %v286, %v292
    %v298 = vadd.f32 %v287, %v292
    %v299 = vadd.f32 %v288, %v292
    %v300 = vadd.f32 %v289, %v292
    %v301 = vadd.f32 %v290, %v292
    %vm302 = vcmp.ge.f32.partialorder %v293, 0.0
    %vm303 = vcmp.ge.f32.partialorder %v294, 0.0
    %vm304 = vcmp.ge.f32.partialorder %v295, 0.0
    %vm305 = vcmp.ge.f32.partialorder %v296, 0.0
    %vm306 = vcmp.ge.f32.partialorder %v297, 0.0
    %vm307 = vcmp.ge.f32.partialorder %v298, 0.0
    %vm308 = vcmp.ge.f32.partialorder %v299, 0.0
    %vm309 = vcmp.ge.f32.partialorder %v300, 0.0
    %vm310 = vcmp.ge.f32.partialorder %v301, 0.0
    %v311 = vmul.f32 %v293, 0.01
    %v312 = vmul.f32 %v294, 0.01
    %v313 = vmul.f32 %v295, 0.01
    %v314 = vmul.f32 %v296, 0.01
    %v315 = vmul.f32 %v297, 0.01
    %v316 = vmul.f32 %v298, 0.01
    %v317 = vmul.f32 %v299, 0.01
    %v318 = vmul.f32 %v300, 0.01
    %v319 = vmul.f32 %v301, 0.01
    %v320 = vsel %vm302, %v293, %v311
    %v321 = vsel %vm303, %v294, %v312
    %v322 = vsel %vm304, %v295, %v313
    %v323 = vsel %vm305, %v296, %v314
    %v324 = vsel %vm306, %v297, %v315
    %v325 = vsel %vm307, %v298, %v316
    %v326 = vsel %vm308, %v299, %v317
    %v327 = vsel %vm309, %v300, %v318
    %v328 = vsel %vm310, %v301, %v319
    %v329 = vld [vmem:[%s2] sm:$0xff]
    %v330 = vld [vmem:[%s2 + $0x8] sm:$0xff]
    %v331 = vld [vmem:[%s2 + $0x10] sm:$0xff]
    %v332 = vld [vmem:[%s2 + $0x18] sm:$0xff]
    %v333 = vld [vmem:[%s2 + $0x20] sm:$0xff]
    %v334 = vld [vmem:[%s2 + $0x28] sm:$0xff]
    %v335 = vld [vmem:[%s2 + $0x30] sm:$0xff]
    %v336 = vld [vmem:[%s2 + $0x38] sm:$0xff]
    %v337 = vld [vmem:[%s2 + $0x40] sm:$0xff]
    %v338 = vld [vmem:[%s2 + $0x48] sm:$0xff]
    %v339 = vld [vmem:[%s2 + $0x50] sm:$0xff]
    %v340 = vld [vmem:[%s2 + $0x58] sm:$0xff]
    %v341 = vld [vmem:[%s2 + $0x60] sm:$0xff]
    %v342 = vld [vmem:[%s2 + $0x68] sm:$0xff]
    %v343 = vld [vmem:[%s2 + $0x70] sm:$0xff]
    %v344 = vld [vmem:[%s2 + $0x78] sm:$0xff]
    %v345 = vld [vmem:[%s2 + $0x120] sm:$0x1]
    %v346 = vperm.slane %v345, 0
    %347 = vmatpush.msra.mxu0 %v344
    %348 = vmatpush.msra.mxu0 %v343
    %349 = vmatpush.msra.mxu0 %v342
    %350 = vmatpush.msra.mxu0 %v341
    %351 = vmatpush.msra.mxu0 %v340
    %352 = vmatpush.msra.mxu0 %v339
    %353 = vmatpush.msra.mxu0 %v338
    %354 = vmatpush.msra.mxu0 %v337
    %355 = vmatpush.msra.mxu0 %v336
    %356 = vmatpush.msra.mxu0 %v335
    %357 = vmatpush.msra.mxu0 %v334
    %358 = vmatpush.msra.mxu0 %v333
    %359 = vmatpush.msra.mxu0 %v332
    %360 = vmatpush.msra.mxu0 %v331
    %361 = vmatpush.msra.mxu0 %v330
    %362 = vmatpush.msra.mxu0 %v329
    %363 = vmatmul.f32.gmra.mxu0 %v320
    %v364 = vpop.f32.mrf.mxu0
    %v365 = vadd.f32 %v346, %v364
    %366 = vmatmul.f32.gmra.mxu0 %v321
    %v367 = vpop.f32.mrf.mxu0
    %v368 = vadd.f32 %v346, %v367
    %369 = vmatmul.f32.gmra.mxu0 %v322
    %v370 = vpop.f32.mrf.mxu0
    %v371 = vadd.f32 %v346, %v370
    %372 = vmatmul.f32.gmra.mxu0 %v323
    %v373 = vpop.f32.mrf.mxu0
    %v374 = vadd.f32 %v346, %v373
    %375 = vmatmul.f32.gmra.mxu0 %v324
    %v376 = vpop.f32.mrf.mxu0
    %v377 = vadd.f32 %v346, %v376
    %378 = vmatmul.f32.gmra.mxu0 %v325
    %v379 = vpop.f32.mrf.mxu0
    %v380 = vadd.f32 %v346, %v379
    %381 = vmatmul.f32.gmra.mxu0 %v326
    %v382 = vpop.f32.mrf.mxu0
    %v383 = vadd.f32 %v346, %v382
    %384 = vmatmul.f32.gmra.mxu0 %v327
    %v385 = vpop.f32.mrf.mxu0
    %v386 = vadd.f32 %v346, %v385
    %387 = vmatmul.f32.gmra.mxu0 %v328
    %v388 = vpop.f32.mrf.mxu0
    %v389 = vadd.f32 %v346, %v388
    %390 = vdwg.mxu0
    %vm391 = vcmp.ge.f32.partialorder %v365, 0.0
    %vm392 = vcmp.ge.f32.partialorder %v368, 0.0
    %vm393 = vcmp.ge.f32.partialorder %v371, 0.0
    %vm394 = vcmp.ge.f32.partialorder %v374, 0.0
    %vm395 = vcmp.ge.f32.partialorder %v377, 0.0
    %vm396 = vcmp.ge.f32.partialorder %v380, 0.0
    %vm397 = vcmp.ge.f32.partialorder %v383, 0.0
    %vm398 = vcmp.ge.f32.partialorder %v386, 0.0
    %vm399 = vcmp.ge.f32.partialorder %v389, 0.0
    %v400 = vmul.f32 %v365, 0.01
    %v401 = vmul.f32 %v368, 0.01
    %v402 = vmul.f32 %v371, 0.01
    %v403 = vmul.f32 %v374, 0.01
    %v404 = vmul.f32 %v377, 0.01
    %v405 = vmul.f32 %v380, 0.01
    %v406 = vmul.f32 %v383, 0.01
    %v407 = vmul.f32 %v386, 0.01
    %v408 = vmul.f32 %v389, 0.01
    %v409 = vsel %vm391, %v365, %v400
    %v410 = vsel %vm392, %v368, %v401
    %v411 = vsel %vm393, %v371, %v402
    %v412 = vsel %vm394, %v374, %v403
    %v413 = vsel %vm395, %v377, %v404
    %v414 = vsel %vm396, %v380, %v405
    %v415 = vsel %vm397, %v383, %v406
    %v416 = vsel %vm398, %v386, %v407
    %v417 = vsel %vm399, %v389, %v408
    %v418 = vld [vmem:[%s2 + $0x80] sm:$0xff]
    %v419 = vld [vmem:[%s2 + $0x88] sm:$0xff]
    %v420 = vld [vmem:[%s2 + $0x90] sm:$0xff]
    %v421 = vld [vmem:[%s2 + $0x98] sm:$0xff]
    %v422 = vld [vmem:[%s2 + $0xa0] sm:$0xff]
    %v423 = vld [vmem:[%s2 + $0xa8] sm:$0xff]
    %v424 = vld [vmem:[%s2 + $0xb0] sm:$0xff]
    %v425 = vld [vmem:[%s2 + $0xb8] sm:$0xff]
    %v426 = vld [vmem:[%s2 + $0xc0] sm:$0xff]
    %v427 = vld [vmem:[%s2 + $0xc8] sm:$0xff]
    %v428 = vld [vmem:[%s2 + $0xd0] sm:$0xff]
    %v429 = vld [vmem:[%s2 + $0xd8] sm:$0xff]
    %v430 = vld [vmem:[%s2 + $0xe0] sm:$0xff]
    %v431 = vld [vmem:[%s2 + $0xe8] sm:$0xff]
    %v432 = vld [vmem:[%s2 + $0xf0] sm:$0xff]
    %v433 = vld [vmem:[%s2 + $0xf8] sm:$0xff]
    %v434 = vld [vmem:[%s2 + $0x100] sm:$0xff]
    %v435 = vld [vmem:[%s2 + $0x108] sm:$0xff]
    %v436 = vmul.f32 %v409, %v418
    %v437 = vmul.f32 %v410, %v419
    %v438 = vmul.f32 %v411, %v420
    %v439 = vmul.f32 %v412, %v421
    %v440 = vmul.f32 %v413, %v422
    %v441 = vmul.f32 %v414, %v423
    %v442 = vmul.f32 %v415, %v424
    %v443 = vmul.f32 %v416, %v425
    %v444 = vmul.f32 %v417, %v426
    %vm445 = vcmask 523264
    %v446 = vsel %vm445, %v436, 0.0
    %447 = vadd.xlane.f32.xlu0 %v446
    %v448 = vpop.xlane.xlu0 %447
    %v449 = vsel %vm445, %v437, 0.0
    %450 = vadd.xlane.f32.xlu0 %v449
    %v451 = vpop.xlane.xlu0 %450
    %v452 = vsel %vm445, %v438, 0.0
    %453 = vadd.xlane.f32.xlu0 %v452
    %v454 = vpop.xlane.xlu0 %453
    %v455 = vsel %vm445, %v439, 0.0
    %456 = vadd.xlane.f32.xlu0 %v455
    %v457 = vpop.xlane.xlu0 %456
    %v458 = vsel %vm445, %v440, 0.0
    %459 = vadd.xlane.f32.xlu0 %v458
    %v460 = vpop.xlane.xlu0 %459
    %v461 = vsel %vm445, %v441, 0.0
    %462 = vadd.xlane.f32.xlu0 %v461
    %v463 = vpop.xlane.xlu0 %462
    %v464 = vsel %vm445, %v442, 0.0
    %465 = vadd.xlane.f32.xlu0 %v464
    %v466 = vpop.xlane.xlu0 %465
    %v467 = vsel %vm445, %v443, 0.0
    %468 = vadd.xlane.f32.xlu0 %v467
    %v469 = vpop.xlane.xlu0 %468
    %v470 = vsel %vm445, %v444, 0.0
    %471 = vadd.xlane.f32.xlu0 %v470
    %v472 = vpop.xlane.xlu0 %471
    %v473 = vmul.f32 %v409, %v427
    %v474 = vmul.f32 %v410, %v428
    %v475 = vmul.f32 %v411, %v429
    %v476 = vmul.f32 %v412, %v430
    %v477 = vmul.f32 %v413, %v431
    %v478 = vmul.f32 %v414, %v432
    %v479 = vmul.f32 %v415, %v433
    %v480 = vmul.f32 %v416, %v434
    %v481 = vmul.f32 %v417, %v435
    %v482 = vsel %vm445, %v473, 0.0
    %483 = vadd.xlane.f32.xlu0 %v482
    %v484 = vpop.xlane.xlu0 %483
    %v485 = vsel %vm445, %v474, 0.0
    %486 = vadd.xlane.f32.xlu0 %v485
    %v487 = vpop.xlane.xlu0 %486
    %v488 = vsel %vm445, %v475, 0.0
    %489 = vadd.xlane.f32.xlu0 %v488
    %v490 = vpop.xlane.xlu0 %489
    %v491 = vsel %vm445, %v476, 0.0
    %492 = vadd.xlane.f32.xlu0 %v491
    %v493 = vpop.xlane.xlu0 %492
    %v494 = vsel %vm445, %v477, 0.0
    %495 = vadd.xlane.f32.xlu0 %v494
    %v496 = vpop.xlane.xlu0 %495
    %v497 = vsel %vm445, %v478, 0.0
    %498 = vadd.xlane.f32.xlu0 %v497
    %v499 = vpop.xlane.xlu0 %498
    %v500 = vsel %vm445, %v479, 0.0
    %501 = vadd.xlane.f32.xlu0 %v500
    %v502 = vpop.xlane.xlu0 %501
    %v503 = vsel %vm445, %v480, 0.0
    %504 = vadd.xlane.f32.xlu0 %v503
    %v505 = vpop.xlane.xlu0 %504
    %v506 = vsel %vm445, %v481, 0.0
    %507 = vadd.xlane.f32.xlu0 %v506
    %v508 = vpop.xlane.xlu0 %507
    %vm509 = vcmask 7168
    %v510 = vsel %vm509, %v448, %v484
    %v511 = vsel %vm509, %v451, %v487
    %v512 = vsel %vm509, %v454, %v490
    %v513 = vsel %vm509, %v457, %v493
    %v514 = vsel %vm509, %v460, %v496
    %v515 = vsel %vm509, %v463, %v499
    %v516 = vsel %vm509, %v466, %v502
    %v517 = vsel %vm509, %v469, %v505
    %v518 = vsel %vm509, %v472, %v508
    %v519 = vld [vmem:[%s2 + $0x110] sm:$0x3]
    %v520 = vld [vmem:[%s2 + $0x128] sm:$0x1]
    %v521 = vperm.slane %v520, 0
    %vm522 = vcmask 588800
    %v524 = vsel %vm522, %v519, 0
    %526 = vmatpush.msra.mxu0 0.0
    %527 = vmatpush.msra.mxu0 0.0
    %528 = vmatpush.msra.mxu0 0.0
    %529 = vmatpush.msra.mxu0 0.0
    %530 = vmatpush.msra.mxu0 0.0
    %531 = vmatpush.msra.mxu0 0.0
    %532 = vmatpush.msra.mxu0 0.0
    %533 = vmatpush.msra.mxu0 %v518
    %534 = vmatpush.msra.mxu0 %v517
    %535 = vmatpush.msra.mxu0 %v516
    %536 = vmatpush.msra.mxu0 %v515
    %537 = vmatpush.msra.mxu0 %v514
    %538 = vmatpush.msra.mxu0 %v513
    %539 = vmatpush.msra.mxu0 %v512
    %540 = vmatpush.msra.mxu0 %v511
    %541 = vmatpush.msra.mxu0 %v510
    %542 = vmatmul.f32.gmra.mxu0 %v524
    %v543 = vpop.f32.mrf.mxu0
    %v544 = vadd.f32 %v521, %v543
    %545 = vdwg.mxu0
    %vm546 = vcmask 9216
    %547 = vst.msk [vmem:[#allocation2] sm:$0x3] %vm546, %v544
    // Predicated region
    $region14: #{model_forward.1} parent=1 // pred_check
      _
    $region15: #{model_forward.1} parent=1 // pred_check_branch
      %549 = sbr.rel (0) target = $region17
    $region16: #{model_forward.1} parent=1 // pred_region
      %551 = vsyncadd [#allocation3], 0
      %s553 = sshll.u32 [#allocation2], 4
      %s554 = int_to_ptr.vmem [resolvable:$true] %s553
      %s555 = sshll.u32 %s3, 4
      %s556 = int_to_ptr.hbm [resolvable:$true] %s555
      %558 = dma.vmem_to_hbm [thread:$0]  %s554, 32, %s556, [#allocation3]
    $region17: #{model_forward.1} parent=1 // pred_fallthru
      _
    // Predicated region
    $region18: #{model_forward.1} parent=1 // pred_check
      _
    $region19: #{model_forward.1} parent=1 // pred_check_branch
      %560 = sbr.rel (0) target = $region21
    $region20: #{model_forward.1} parent=1 // pred_region
      %562 = dma.done [#allocation3], 32
    $region21: #{model_forward.1} parent=1 // pred_fallthru
      _
    %563 = vsyncpa [#allocation3], 1

</llo_original>
